<compile_context>
chip_gen: v5e
topology: v5e:2x2
jax: 0.10.0
libtpu: 0.0.40
codegen_flags: <defaults>
</compile_context>

<pallas_src>
import jax
import jax.numpy as jnp
from jax.experimental import pallas as pl
from jax.experimental.pallas import tpu as pltpu


def _round_up(a, b):
    return (a + b - 1) // b * b


def _ann_kernel(x_ref, wi_ref, bi_ref, wh_ref, bh_ref, wo_ref, bo_ref, out_ref):
    x = x_ref[...]                                                     # (BM, nx)
    h = jnp.maximum(
        jnp.dot(x, wi_ref[...], preferred_element_type=jnp.float32) + bi_ref[...],
        0.0)                                                           # (BM, Hp)
    h2 = (jnp.dot(h, wh_ref[...], preferred_element_type=jnp.float32)
          + bh_ref[...])                                               # (BM, Hp)
    out = (jnp.dot(h2, wo_ref[...], preferred_element_type=jnp.float32)
           + bo_ref[...])                                              # (BM, ny)
    out_ref[...] = out.astype(out_ref.dtype)


def ann_forward(x, params, y=None):
    """x: (nt, ngrid, nx) f32.  `y` is accepted for API parity but ignored,
    exactly like AnnModel.forward."""
    del y
    wi, bi, wh, bh, wo, bo = params
    nt, ngrid, nx = x.shape
    hidden = wi.shape[1]
    ny = wo.shape[1]

    # ---- flatten the independent (time, grid) axes into one big M axis ----
    M = nt * ngrid
    BM = min(1024, _round_up(M, 8))           # row tile, multiple of 8 sublanes
    Mp = _round_up(M, BM)
    x2 = x.reshape(M, nx).astype(jnp.float32)
    if Mp != M:
        x2 = jnp.pad(x2, ((0, Mp - M), (0, 0)))

    # ---- zero-pad hidden to a multiple of 128 lanes (mathematically exact) --
    Hp = _round_up(hidden, 128)
    wi_p = jnp.zeros((nx, Hp), jnp.float32).at[:, :hidden].set(wi)
    bi_p = jnp.zeros((1, Hp), jnp.float32).at[:, :hidden].set(bi.reshape(1, hidden))
    wh_p = jnp.zeros((Hp, Hp), jnp.float32).at[:hidden, :hidden].set(wh)
    bh_p = jnp.zeros((1, Hp), jnp.float32).at[:, :hidden].set(bh.reshape(1, hidden))
    wo_p = jnp.zeros((Hp, ny), jnp.float32).at[:hidden, :].set(wo)
    bo_p = bo.reshape(1, ny).astype(jnp.float32)

    grid = (Mp // BM,)
    full = lambda shape: pl.BlockSpec(shape, lambda i: (0,) * len(shape))

    flops = 2 * Mp * (nx * Hp + Hp * Hp + Hp * ny)
    bytes_accessed = 4 * (Mp * nx + Mp * ny
                          + nx * Hp + Hp + Hp * Hp + Hp + Hp * ny + ny)

    out2 = pl.pallas_call(
        _ann_kernel,
        out_shape=jax.ShapeDtypeStruct((Mp, ny), jnp.float32),
        grid=grid,
        in_specs=[
            pl.BlockSpec((BM, nx), lambda i: (i, 0)),    # x rows (tiled over M)
            full((nx, Hp)),                              # Wi  (resident)
            full((1, Hp)),                               # bi
            full((Hp, Hp)),                              # Wh
            full((1, Hp)),                               # bh
            full((Hp, ny)),                              # Wo
            full((1, ny)),                               # bo
        ],
        out_specs=pl.BlockSpec((BM, ny), lambda i: (i, 0)),
        compiler_params=pltpu.CompilerParams(
            dimension_semantics=("parallel",),           # megacore on v7x
            vmem_limit_bytes=64 << 20,
        ),
        cost_estimate=pl.CostEstimate(
            flops=flops, transcendentals=0, bytes_accessed=bytes_accessed),
    )(x2, wi_p, bi_p, wh_p, bh_p, wo_p, bo_p)

    return out2[:M].reshape(nt, ngrid, ny)


def ref_forward(x, params):
    """Pure-JAX reference matching the PyTorch loop (per-timestep MLP)."""
    wi, bi, wh, bh, wo, bo = params
    h = jax.nn.relu(x @ wi + bi)     # (nt, ngrid, H)
    h2 = h @ wh + bh
    return h2 @ wo + bo              # (nt, ngrid, ny)


def init_params(key, nx, ny, hidden):
    """Deterministic Linear-style init, weights stored pre-transposed (in, out)."""
    ks = jax.random.split(key, 6)
    si = 1.0 / jnp.sqrt(float(nx))
    sh = 1.0 / jnp.sqrt(float(hidden))
    wi = jax.random.uniform(ks[0], (nx, hidden), jnp.float32, -si, si)
    bi = jax.random.uniform(ks[1], (1, hidden), jnp.float32, -si, si)
    wh = jax.random.uniform(ks[2], (hidden, hidden), jnp.float32, -sh, sh)
    bh = jax.random.uniform(ks[3], (1, hidden), jnp.float32, -sh, sh)
    wo = jax.random.uniform(ks[4], (hidden, ny), jnp.float32, -sh, sh)
    bo = jax.random.uniform(ks[5], (1, ny), jnp.float32, -sh, sh)
    return (wi, bi, wh, bh, wo, bo)


if __name__ == "__main__":
    nt, ngrid, nx, hidden, ny = 8, 16, 8, 32, 1

    key = jax.random.PRNGKey(0)
    k_x, k_p = jax.random.split(key, 2)

    x = jax.random.normal(k_x, (nt, ngrid, nx), jnp.float32)
    params = init_params(k_p, nx, ny, hidden)

    out = ann_forward(x, params)
    out = jax.block_until_ready(out)

    ref = ref_forward(x, params)
    assert out.shape == (nt, ngrid, ny)
    assert jnp.allclose(out, ref, atol=1e-5, rtol=1e-5), "mismatch vs reference"

    print("KERNEL_OK")
</pallas_src>

<mosaic_0001>
module attributes {stable_mosaic.version = 11 : i64} {
  func.func @_ann_kernel(%arg0: i32, %arg1: memref<128x8xf32, #tpu.memory_space<vmem>>, %arg2: memref<8x128xf32, #tpu.memory_space<vmem>>, %arg3: memref<1x128xf32, #tpu.memory_space<vmem>>, %arg4: memref<128x128xf32, #tpu.memory_space<vmem>>, %arg5: memref<1x128xf32, #tpu.memory_space<vmem>>, %arg6: memref<128x1xf32, #tpu.memory_space<vmem>>, %arg7: memref<1x1xf32, #tpu.memory_space<vmem>>, %arg8: memref<128x1xf32, #tpu.memory_space<vmem>>) attributes {dimension_semantics = [#tpu.dimension_semantics<parallel>], iteration_bounds = array<i64: 1>, scalar_prefetch = 0 : i64, scratch_operands = 0 : i64, tpu.core_type = #tpu.core_type<tc>, window_params = [{transform_indices = @transform_0, window_bounds = array<i64: 128, 8>}, {pipeline_mode = #tpu.pipeline_mode<synchronous>, transform_indices = @transform_1, window_bounds = array<i64: 8, 128>}, {pipeline_mode = #tpu.pipeline_mode<synchronous>, transform_indices = @transform_2, window_bounds = array<i64: 1, 128>}, {pipeline_mode = #tpu.pipeline_mode<synchronous>, transform_indices = @transform_3, window_bounds = array<i64: 128, 128>}, {pipeline_mode = #tpu.pipeline_mode<synchronous>, transform_indices = @transform_4, window_bounds = array<i64: 1, 128>}, {pipeline_mode = #tpu.pipeline_mode<synchronous>, transform_indices = @transform_5, window_bounds = array<i64: 128, 1>}, {pipeline_mode = #tpu.pipeline_mode<synchronous>, transform_indices = @transform_6, window_bounds = array<i64: 1, 1>}, {transform_indices = @transform_7, window_bounds = array<i64: 128, 1>}]} {
    %c0 = arith.constant 0 : index
    %c0_0 = arith.constant 0 : index
    %0 = vector.load %arg1[%c0, %c0_0] : memref<128x8xf32, #tpu.memory_space<vmem>>, vector<128x8xf32>
    %c0_1 = arith.constant 0 : index
    %c0_2 = arith.constant 0 : index
    %1 = vector.load %arg2[%c0_1, %c0_2] : memref<8x128xf32, #tpu.memory_space<vmem>>, vector<8x128xf32>
    %cst = arith.constant dense<0.000000e+00> : vector<128x128xf32>
    %2 = tpu.matmul %0, %1, %cst {dimension_numbers = #tpu.dot_dimension_numbers<[1], [0], [0], [1], [0, 0, 1, 1], [], []>} : vector<128x8xf32>, vector<8x128xf32>, vector<128x128xf32> -> vector<128x128xf32>
    %c0_3 = arith.constant 0 : index
    %c0_4 = arith.constant 0 : index
    %3 = vector.load %arg3[%c0_3, %c0_4] : memref<1x128xf32, #tpu.memory_space<vmem>>, vector<1x128xf32>
    %4 = vector.broadcast %3 : vector<1x128xf32> to vector<128x128xf32>
    %5 = arith.addf %2, %4 : vector<128x128xf32>
    %cst_5 = arith.constant 0.000000e+00 : f32
    %6 = vector.broadcast %cst_5 : f32 to vector<128x128xf32>
    %7 = arith.maximumf %5, %6 : vector<128x128xf32>
    %c0_6 = arith.constant 0 : index
    %c0_7 = arith.constant 0 : index
    %8 = vector.load %arg4[%c0_6, %c0_7] : memref<128x128xf32, #tpu.memory_space<vmem>>, vector<128x128xf32>
    %cst_8 = arith.constant dense<0.000000e+00> : vector<128x128xf32>
    %9 = tpu.matmul %7, %8, %cst_8 {dimension_numbers = #tpu.dot_dimension_numbers<[1], [0], [0], [1], [0, 0, 1, 1], [], []>} : vector<128x128xf32>, vector<128x128xf32>, vector<128x128xf32> -> vector<128x128xf32>
    %c0_9 = arith.constant 0 : index
    %c0_10 = arith.constant 0 : index
    %10 = vector.load %arg5[%c0_9, %c0_10] : memref<1x128xf32, #tpu.memory_space<vmem>>, vector<1x128xf32>
    %11 = vector.broadcast %10 : vector<1x128xf32> to vector<128x128xf32>
    %12 = arith.addf %9, %11 : vector<128x128xf32>
    %c0_11 = arith.constant 0 : index
    %c0_12 = arith.constant 0 : index
    %13 = vector.load %arg6[%c0_11, %c0_12] : memref<128x1xf32, #tpu.memory_space<vmem>>, vector<128x1xf32>
    %cst_13 = arith.constant dense<0.000000e+00> : vector<128x1xf32>
    %14 = tpu.matmul %12, %13, %cst_13 {dimension_numbers = #tpu.dot_dimension_numbers<[1], [0], [0], [1], [0, 0, 1, 1], [], []>} : vector<128x128xf32>, vector<128x1xf32>, vector<128x1xf32> -> vector<128x1xf32>
    %c0_14 = arith.constant 0 : index
    %c0_15 = arith.constant 0 : index
    %15 = vector.load %arg7[%c0_14, %c0_15] : memref<1x1xf32, #tpu.memory_space<vmem>>, vector<1x1xf32>
    %16 = vector.broadcast %15 : vector<1x1xf32> to vector<128x1xf32>
    %17 = arith.addf %14, %16 : vector<128x1xf32>
    %c0_16 = arith.constant 0 : index
    %c0_17 = arith.constant 0 : index
    %18 = vector.load %arg8[%c0_16, %c0_17] : memref<128x1xf32, #tpu.memory_space<vmem>>, vector<128x1xf32>
    tpu.vector_store %arg8[%c0_16, %c0_17], %17 {strides = array<i32>} : memref<128x1xf32, #tpu.memory_space<vmem>>, vector<128x1xf32>,
    return
  }
  func.func @transform_0(%arg0: i32) -> (i32, i32) {
    %c0_i32 = arith.constant 0 : i32
    %c0_i32_0 = arith.constant 0 : i32
    return %arg0, %c0_i32 : i32, i32
  }
  func.func @transform_1(%arg0: i32) -> (i32, i32) {
    %c0_i32 = arith.constant 0 : i32
    %c0_i32_0 = arith.constant 0 : i32
    %c0_i32_1 = arith.constant 0 : i32
    return %c0_i32, %c0_i32_0 : i32, i32
  }
  func.func @transform_2(%arg0: i32) -> (i32, i32) {
    %c0_i32 = arith.constant 0 : i32
    %c0_i32_0 = arith.constant 0 : i32
    %c0_i32_1 = arith.constant 0 : i32
    return %c0_i32, %c0_i32_0 : i32, i32
  }
  func.func @transform_3(%arg0: i32) -> (i32, i32) {
    %c0_i32 = arith.constant 0 : i32
    %c0_i32_0 = arith.constant 0 : i32
    %c0_i32_1 = arith.constant 0 : i32
    return %c0_i32, %c0_i32_0 : i32, i32
  }
  func.func @transform_4(%arg0: i32) -> (i32, i32) {
    %c0_i32 = arith.constant 0 : i32
    %c0_i32_0 = arith.constant 0 : i32
    %c0_i32_1 = arith.constant 0 : i32
    return %c0_i32, %c0_i32_0 : i32, i32
  }
  func.func @transform_5(%arg0: i32) -> (i32, i32) {
    %c0_i32 = arith.constant 0 : i32
    %c0_i32_0 = arith.constant 0 : i32
    %c0_i32_1 = arith.constant 0 : i32
    return %c0_i32, %c0_i32_0 : i32, i32
  }
  func.func @transform_6(%arg0: i32) -> (i32, i32) {
    %c0_i32 = arith.constant 0 : i32
    %c0_i32_0 = arith.constant 0 : i32
    %c0_i32_1 = arith.constant 0 : i32
    return %c0_i32, %c0_i32_0 : i32, i32
  }
  func.func @transform_7(%arg0: i32) -> (i32, i32) {
    %c0_i32 = arith.constant 0 : i32
    %c0_i32_0 = arith.constant 0 : i32
    return %arg0, %c0_i32 : i32, i32
  }
}

</mosaic_0001>

<llo_original>
// kernel: tpu_custom_call.1
$region0: #{tpu_custom_call.1}
  #allocation0 [shape = 'u32[]', space=smem, size = 0x4, offset = 0x4, fixed_abs, tag = 'smem constant byte address 0x4 - core index']
  #allocation1 [shape = 'u32[72,128]{1,0:T(1,128)}', space=vmem, size = 0x9000, scoped, tag = 'internal scratch']
  #allocation2 [shape = 'f32[1,1]{1,0:T(1,128)S(1)}', space=vmem, size = 0x200, scoped, tag = 'scoped memory for tpu_custom_call.1']
  %s0 = inlined_call_operand.vmem [shape: f32[128,8], index: 0, kind: input, shape index: {}]
  %s1 = inlined_call_operand.vmem [shape: f32[8,128], index: 1, kind: input, shape index: {}]
  %s2 = inlined_call_operand.vmem [shape: f32[1,128], index: 2, kind: input, shape index: {}]
  %s3 = inlined_call_operand.vmem [shape: f32[128,128], index: 3, kind: input, shape index: {}]
  %s4 = inlined_call_operand.vmem [shape: f32[1,128], index: 4, kind: input, shape index: {}]
  %s5 = inlined_call_operand.vmem [shape: f32[128,1], index: 5, kind: input, shape index: {}]
  %s6 = inlined_call_operand.<no memory space> [shape: f32[1,1], index: 6, kind: input, shape index: {}]
  %s7 = inlined_call_operand.vmem [shape: f32[128,1], index: 7, kind: output, shape index: {}]
  %s8 = sld [smem:[#allocation0]]
  $region38: #{tpu_custom_call.1} parent=0
    _
  %s10 = ssub.s32 1, %s8
  %s11 = scalar_select 0, %s10, %s8
  %v12 = vstv %s6
  %13 = vst [vmem:[#allocation2] sm:$0x1] %v12
  // Predicated region
  $region2: #{tpu_custom_call.1} parent=0 // pred_check
    _
  $region3: #{tpu_custom_call.1} parent=0 // pred_check_branch
    %15 = sbr.rel (0) target = $region5
  $region4: #{tpu_custom_call.1} parent=0 // pred_region
    _
  $region5: #{tpu_custom_call.1} parent=0 // pred_fallthru
    _
  // Predicated region
  $region6: #{tpu_custom_call.1} parent=0 // pred_check
    _
  $region7: #{tpu_custom_call.1} parent=0 // pred_check_branch
    %17 = sbr.rel (0) target = $region9
  $region8: #{tpu_custom_call.1} parent=0 // pred_region
    _
  $region9: #{tpu_custom_call.1} parent=0 // pred_fallthru
    _
  // Predicated region
  $region10: #{tpu_custom_call.1} parent=0 // pred_check
    _
  $region11: #{tpu_custom_call.1} parent=0 // pred_check_branch
    %19 = sbr.rel (0) target = $region13
  $region12: #{tpu_custom_call.1} parent=0 // pred_region
    _
  $region13: #{tpu_custom_call.1} parent=0 // pred_fallthru
    _
  // Predicated region
  $region14: #{tpu_custom_call.1} parent=0 // pred_check
    _
  $region15: #{tpu_custom_call.1} parent=0 // pred_check_branch
    %21 = sbr.rel (0) target = $region17
  $region16: #{tpu_custom_call.1} parent=0 // pred_region
    _
  $region17: #{tpu_custom_call.1} parent=0 // pred_fallthru
    _
  // Predicated region
  $region18: #{tpu_custom_call.1} parent=0 // pred_check
    _
  $region19: #{tpu_custom_call.1} parent=0 // pred_check_branch
    %23 = sbr.rel (0) target = $region21
  $region20: #{tpu_custom_call.1} parent=0 // pred_region
    _
  $region21: #{tpu_custom_call.1} parent=0 // pred_fallthru
    _
  // Predicated region
  $region22: #{tpu_custom_call.1} parent=0 // pred_check
    _
  $region23: #{tpu_custom_call.1} parent=0 // pred_check_branch
    %25 = sbr.rel (0) target = $region25
  $region24: #{tpu_custom_call.1} parent=0 // pred_region
    _
  $region25: #{tpu_custom_call.1} parent=0 // pred_fallthru
    _
  // Predicated region
  $region26: #{tpu_custom_call.1} parent=0 // pred_check
    _
  $region27: #{tpu_custom_call.1} parent=0 // pred_check_branch
    %27 = sbr.rel (0) target = $region29
  $region28: #{tpu_custom_call.1} parent=0 // pred_region
    _
  $region29: #{tpu_custom_call.1} parent=0 // pred_fallthru
    _
  %v28 = vld [vmem:[%s0] sm:$0xff]
  %v29 = vld [vmem:[%s0 + $0x8] sm:$0xff]
  %v30 = vld [vmem:[%s0 + $0x10] sm:$0xff]
  %v31 = vld [vmem:[%s0 + $0x18] sm:$0xff]
  %v32 = vld [vmem:[%s0 + $0x20] sm:$0xff]
  %v33 = vld [vmem:[%s0 + $0x28] sm:$0xff]
  %v34 = vld [vmem:[%s0 + $0x30] sm:$0xff]
  %v35 = vld [vmem:[%s0 + $0x38] sm:$0xff]
  %v36 = vld [vmem:[%s0 + $0x40] sm:$0xff]
  %v37 = vld [vmem:[%s0 + $0x48] sm:$0xff]
  %v38 = vld [vmem:[%s0 + $0x50] sm:$0xff]
  %v39 = vld [vmem:[%s0 + $0x58] sm:$0xff]
  %v40 = vld [vmem:[%s0 + $0x60] sm:$0xff]
  %v41 = vld [vmem:[%s0 + $0x68] sm:$0xff]
  %v42 = vld [vmem:[%s0 + $0x70] sm:$0xff]
  %v43 = vld [vmem:[%s0 + $0x78] sm:$0xff]
  %v44 = vld [vmem:[%s1] sm:$0xff]
  %v45 = vld [vmem:[%s2] sm:$0x1]
  %v47 = vperm.slane %v45, 0
  %vm49 = vcmask 64512
  %v51 = vsel %vm49, %v28, 0
  %v54 = vsel %vm49, %v29, 0
  %v57 = vsel %vm49, %v30, 0
  %v60 = vsel %vm49, %v31, 0
  %v63 = vsel %vm49, %v32, 0
  %v66 = vsel %vm49, %v33, 0
  %v69 = vsel %vm49, %v34, 0
  %v72 = vsel %vm49, %v35, 0
  %v75 = vsel %vm49, %v36, 0
  %v78 = vsel %vm49, %v37, 0
  %v81 = vsel %vm49, %v38, 0
  %v84 = vsel %vm49, %v39, 0
  %v87 = vsel %vm49, %v40, 0
  %v90 = vsel %vm49, %v41, 0
  %v93 = vsel %vm49, %v42, 0
  %v96 = vsel %vm49, %v43, 0
  %98 = vmatpush.msra.mxu0 0.0
  %99 = vmatpush.msra.mxu0 0.0
  %100 = vmatpush.msra.mxu0 0.0
  %101 = vmatpush.msra.mxu0 0.0
  %102 = vmatpush.msra.mxu0 0.0
  %103 = vmatpush.msra.mxu0 0.0
  %104 = vmatpush.msra.mxu0 0.0
  %105 = vmatpush.msra.mxu0 0.0
  %106 = vmatpush.msra.mxu0 0.0
  %107 = vmatpush.msra.mxu0 0.0
  %108 = vmatpush.msra.mxu0 0.0
  %109 = vmatpush.msra.mxu0 0.0
  %110 = vmatpush.msra.mxu0 0.0
  %111 = vmatpush.msra.mxu0 0.0
  %112 = vmatpush.msra.mxu0 0.0
  %113 = vmatpush.msra.mxu0 %v44
  %114 = vmatmul.f32.gmra.mxu0 %v51
  %v115 = vpop.f32.mrf.mxu0
  %v116 = vadd.f32 %v47, %v115
  %117 = vmatmul.f32.gmra.mxu0 %v54
  %v118 = vpop.f32.mrf.mxu0
  %v119 = vadd.f32 %v47, %v118
  %120 = vmatmul.f32.gmra.mxu0 %v57
  %v121 = vpop.f32.mrf.mxu0
  %v122 = vadd.f32 %v47, %v121
  %123 = vmatmul.f32.gmra.mxu0 %v60
  %v124 = vpop.f32.mrf.mxu0
  %v125 = vadd.f32 %v47, %v124
  %126 = vmatmul.f32.gmra.mxu0 %v63
  %v127 = vpop.f32.mrf.mxu0
  %v128 = vadd.f32 %v47, %v127
  %129 = vmatmul.f32.gmra.mxu0 %v66
  %v130 = vpop.f32.mrf.mxu0
  %v131 = vadd.f32 %v47, %v130
  %132 = vmatmul.f32.gmra.mxu0 %v69
  %v133 = vpop.f32.mrf.mxu0
  %v134 = vadd.f32 %v47, %v133
  %135 = vmatmul.f32.gmra.mxu0 %v72
  %v136 = vpop.f32.mrf.mxu0
  %v137 = vadd.f32 %v47, %v136
  %138 = vmatmul.f32.gmra.mxu0 %v75
  %v139 = vpop.f32.mrf.mxu0
  %v140 = vadd.f32 %v47, %v139
  %141 = vmatmul.f32.gmra.mxu0 %v78
  %v142 = vpop.f32.mrf.mxu0
  %v143 = vadd.f32 %v47, %v142
  %144 = vmatmul.f32.gmra.mxu0 %v81
  %v145 = vpop.f32.mrf.mxu0
  %v146 = vadd.f32 %v47, %v145
  %147 = vmatmul.f32.gmra.mxu0 %v84
  %v148 = vpop.f32.mrf.mxu0
  %v149 = vadd.f32 %v47, %v148
  %150 = vmatmul.f32.gmra.mxu0 %v87
  %v151 = vpop.f32.mrf.mxu0
  %v152 = vadd.f32 %v47, %v151
  %153 = vmatmul.f32.gmra.mxu0 %v90
  %v154 = vpop.f32.mrf.mxu0
  %v155 = vadd.f32 %v47, %v154
  %156 = vmatmul.f32.gmra.mxu0 %v93
  %v157 = vpop.f32.mrf.mxu0
  %v158 = vadd.f32 %v47, %v157
  %159 = vmatmul.f32.gmra.mxu0 %v96
  %v160 = vpop.f32.mrf.mxu0
  %v161 = vadd.f32 %v47, %v160
  %162 = vdwg.mxu0
  %v163 = vmax.f32 %v116, 0.0
  %v164 = vmax.f32 %v119, 0.0
  %v165 = vmax.f32 %v122, 0.0
  %v166 = vmax.f32 %v125, 0.0
  %v167 = vmax.f32 %v128, 0.0
  %v168 = vmax.f32 %v131, 0.0
  %v169 = vmax.f32 %v134, 0.0
  %v170 = vmax.f32 %v137, 0.0
  %v171 = vmax.f32 %v140, 0.0
  %v172 = vmax.f32 %v143, 0.0
  %v173 = vmax.f32 %v146, 0.0
  %v174 = vmax.f32 %v149, 0.0
  %v175 = vmax.f32 %v152, 0.0
  %v176 = vmax.f32 %v155, 0.0
  %v177 = vmax.f32 %v158, 0.0
  %v178 = vmax.f32 %v161, 0.0
  %v179 = vld [vmem:[%s3] sm:$0xff]
  %v180 = vld [vmem:[%s3 + $0x8] sm:$0xff]
  %v181 = vld [vmem:[%s3 + $0x10] sm:$0xff]
  %v182 = vld [vmem:[%s3 + $0x18] sm:$0xff]
  %v183 = vld [vmem:[%s3 + $0x20] sm:$0xff]
  %v184 = vld [vmem:[%s3 + $0x28] sm:$0xff]
  %v185 = vld [vmem:[%s3 + $0x30] sm:$0xff]
  %v186 = vld [vmem:[%s3 + $0x38] sm:$0xff]
  %v187 = vld [vmem:[%s3 + $0x40] sm:$0xff]
  %v188 = vld [vmem:[%s3 + $0x48] sm:$0xff]
  %v189 = vld [vmem:[%s3 + $0x50] sm:$0xff]
  %v190 = vld [vmem:[%s3 + $0x58] sm:$0xff]
  %v191 = vld [vmem:[%s3 + $0x60] sm:$0xff]
  %v192 = vld [vmem:[%s3 + $0x68] sm:$0xff]
  %v193 = vld [vmem:[%s3 + $0x70] sm:$0xff]
  %v194 = vld [vmem:[%s3 + $0x78] sm:$0xff]
  %v195 = vld [vmem:[%s4] sm:$0x1]
  %v197 = vperm.slane %v195, 0
  %199 = vmatpush.msra.mxu0 %v194
  %200 = vmatpush.msra.mxu0 %v193
  %201 = vmatpush.msra.mxu0 %v192
  %202 = vmatpush.msra.mxu0 %v191
  %203 = vmatpush.msra.mxu0 %v190
  %204 = vmatpush.msra.mxu0 %v189
  %205 = vmatpush.msra.mxu0 %v188
  %206 = vmatpush.msra.mxu0 %v187
  %207 = vmatpush.msra.mxu0 %v186
  %208 = vmatpush.msra.mxu0 %v185
  %209 = vmatpush.msra.mxu0 %v184
  %210 = vmatpush.msra.mxu0 %v183
  %211 = vmatpush.msra.mxu0 %v182
  %212 = vmatpush.msra.mxu0 %v181
  %213 = vmatpush.msra.mxu0 %v180
  %214 = vmatpush.msra.mxu0 %v179
  %215 = vmatmul.f32.gmra.mxu0 %v163
  %v216 = vpop.f32.mrf.mxu0
  %v217 = vadd.f32 %v197, %v216
  %218 = vmatmul.f32.gmra.mxu0 %v164
  %v219 = vpop.f32.mrf.mxu0
  %v220 = vadd.f32 %v197, %v219
  %221 = vmatmul.f32.gmra.mxu0 %v165
  %v222 = vpop.f32.mrf.mxu0
  %v223 = vadd.f32 %v197, %v222
  %224 = vmatmul.f32.gmra.mxu0 %v166
  %v225 = vpop.f32.mrf.mxu0
  %v226 = vadd.f32 %v197, %v225
  %227 = vmatmul.f32.gmra.mxu0 %v167
  %v228 = vpop.f32.mrf.mxu0
  %v229 = vadd.f32 %v197, %v228
  %230 = vmatmul.f32.gmra.mxu0 %v168
  %v231 = vpop.f32.mrf.mxu0
  %v232 = vadd.f32 %v197, %v231
  %233 = vmatmul.f32.gmra.mxu0 %v169
  %v234 = vpop.f32.mrf.mxu0
  %v235 = vadd.f32 %v197, %v234
  %236 = vmatmul.f32.gmra.mxu0 %v170
  %v237 = vpop.f32.mrf.mxu0
  %v238 = vadd.f32 %v197, %v237
  %239 = vmatmul.f32.gmra.mxu0 %v171
  %v240 = vpop.f32.mrf.mxu0
  %v241 = vadd.f32 %v197, %v240
  %242 = vmatmul.f32.gmra.mxu0 %v172
  %v243 = vpop.f32.mrf.mxu0
  %v244 = vadd.f32 %v197, %v243
  %245 = vmatmul.f32.gmra.mxu0 %v173
  %v246 = vpop.f32.mrf.mxu0
  %v247 = vadd.f32 %v197, %v246
  %248 = vmatmul.f32.gmra.mxu0 %v174
  %v249 = vpop.f32.mrf.mxu0
  %v250 = vadd.f32 %v197, %v249
  %251 = vmatmul.f32.gmra.mxu0 %v175
  %v252 = vpop.f32.mrf.mxu0
  %v253 = vadd.f32 %v197, %v252
  %254 = vmatmul.f32.gmra.mxu0 %v176
  %v255 = vpop.f32.mrf.mxu0
  %v256 = vadd.f32 %v197, %v255
  %257 = vmatmul.f32.gmra.mxu0 %v177
  %v258 = vpop.f32.mrf.mxu0
  %v259 = vadd.f32 %v197, %v258
  %260 = vmatmul.f32.gmra.mxu0 %v178
  %v261 = vpop.f32.mrf.mxu0
  %v262 = vadd.f32 %v197, %v261
  %263 = vdwg.mxu0
  %v264 = vld [vmem:[%s5] sm:$0xff]
  %v265 = vld [vmem:[%s5 + $0x8] sm:$0xff]
  %v266 = vld [vmem:[%s5 + $0x10] sm:$0xff]
  %v267 = vld [vmem:[%s5 + $0x18] sm:$0xff]
  %v268 = vld [vmem:[%s5 + $0x20] sm:$0xff]
  %v269 = vld [vmem:[%s5 + $0x28] sm:$0xff]
  %v270 = vld [vmem:[%s5 + $0x30] sm:$0xff]
  %v271 = vld [vmem:[%s5 + $0x38] sm:$0xff]
  %v272 = vld [vmem:[%s5 + $0x40] sm:$0xff]
  %v273 = vld [vmem:[%s5 + $0x48] sm:$0xff]
  %v274 = vld [vmem:[%s5 + $0x50] sm:$0xff]
  %v275 = vld [vmem:[%s5 + $0x58] sm:$0xff]
  %v276 = vld [vmem:[%s5 + $0x60] sm:$0xff]
  %v277 = vld [vmem:[%s5 + $0x68] sm:$0xff]
  %v278 = vld [vmem:[%s5 + $0x70] sm:$0xff]
  %v279 = vld [vmem:[%s5 + $0x78] sm:$0xff]
  %v280 = vld [vmem:[#allocation2] sm:$0x1]
  %v282 = vperm.slane %v280, 0
  %284 = vmatpush.msra.mxu0 %v279
  %285 = vmatpush.msra.mxu0 %v278
  %286 = vmatpush.msra.mxu0 %v277
  %287 = vmatpush.msra.mxu0 %v276
  %288 = vmatpush.msra.mxu0 %v275
  %289 = vmatpush.msra.mxu0 %v274
  %290 = vmatpush.msra.mxu0 %v273
  %291 = vmatpush.msra.mxu0 %v272
  %292 = vmatpush.msra.mxu0 %v271
  %293 = vmatpush.msra.mxu0 %v270
  %294 = vmatpush.msra.mxu0 %v269
  %295 = vmatpush.msra.mxu0 %v268
  %296 = vmatpush.msra.mxu0 %v267
  %297 = vmatpush.msra.mxu0 %v266
  %298 = vmatpush.msra.mxu0 %v265
  %299 = vmatpush.msra.mxu0 %v264
  %300 = vmatmul.f32.gmra.mxu0 %v217
  %v301 = vpop.f32.mrf.mxu0
  %v302 = vadd.f32 %v282, %v301
  %303 = vmatmul.f32.gmra.mxu0 %v220
  %v304 = vpop.f32.mrf.mxu0
  %v305 = vadd.f32 %v282, %v304
  %306 = vmatmul.f32.gmra.mxu0 %v223
  %v307 = vpop.f32.mrf.mxu0
  %v308 = vadd.f32 %v282, %v307
  %309 = vmatmul.f32.gmra.mxu0 %v226
  %v310 = vpop.f32.mrf.mxu0
  %v311 = vadd.f32 %v282, %v310
  %312 = vmatmul.f32.gmra.mxu0 %v229
  %v313 = vpop.f32.mrf.mxu0
  %v314 = vadd.f32 %v282, %v313
  %315 = vmatmul.f32.gmra.mxu0 %v232
  %v316 = vpop.f32.mrf.mxu0
  %v317 = vadd.f32 %v282, %v316
  %318 = vmatmul.f32.gmra.mxu0 %v235
  %v319 = vpop.f32.mrf.mxu0
  %v320 = vadd.f32 %v282, %v319
  %321 = vmatmul.f32.gmra.mxu0 %v238
  %v322 = vpop.f32.mrf.mxu0
  %v323 = vadd.f32 %v282, %v322
  %324 = vmatmul.f32.gmra.mxu0 %v241
  %v325 = vpop.f32.mrf.mxu0
  %v326 = vadd.f32 %v282, %v325
  %327 = vmatmul.f32.gmra.mxu0 %v244
  %v328 = vpop.f32.mrf.mxu0
  %v329 = vadd.f32 %v282, %v328
  %330 = vmatmul.f32.gmra.mxu0 %v247
  %v331 = vpop.f32.mrf.mxu0
  %v332 = vadd.f32 %v282, %v331
  %333 = vmatmul.f32.gmra.mxu0 %v250
  %v334 = vpop.f32.mrf.mxu0
  %v335 = vadd.f32 %v282, %v334
  %336 = vmatmul.f32.gmra.mxu0 %v253
  %v337 = vpop.f32.mrf.mxu0
  %v338 = vadd.f32 %v282, %v337
  %339 = vmatmul.f32.gmra.mxu0 %v256
  %v340 = vpop.f32.mrf.mxu0
  %v341 = vadd.f32 %v282, %v340
  %342 = vmatmul.f32.gmra.mxu0 %v259
  %v343 = vpop.f32.mrf.mxu0
  %v344 = vadd.f32 %v282, %v343
  %345 = vmatmul.f32.gmra.mxu0 %v262
  %v346 = vpop.f32.mrf.mxu0
  %v347 = vadd.f32 %v282, %v346
  %348 = vdwg.mxu0
  %vm349 = vcmask 7168
  %350 = vst.msk [vmem:[%s7] sm:$0xff] %vm349, %v302
  %351 = vst.msk [vmem:[%s7 + $0x8] sm:$0xff] %vm349, %v305
  %352 = vst.msk [vmem:[%s7 + $0x10] sm:$0xff] %vm349, %v308
  %353 = vst.msk [vmem:[%s7 + $0x18] sm:$0xff] %vm349, %v311
  %354 = vst.msk [vmem:[%s7 + $0x20] sm:$0xff] %vm349, %v314
  %355 = vst.msk [vmem:[%s7 + $0x28] sm:$0xff] %vm349, %v317
  %356 = vst.msk [vmem:[%s7 + $0x30] sm:$0xff] %vm349, %v320
  %357 = vst.msk [vmem:[%s7 + $0x38] sm:$0xff] %vm349, %v323
  %358 = vst.msk [vmem:[%s7 + $0x40] sm:$0xff] %vm349, %v326
  %359 = vst.msk [vmem:[%s7 + $0x48] sm:$0xff] %vm349, %v329
  %360 = vst.msk [vmem:[%s7 + $0x50] sm:$0xff] %vm349, %v332
  %361 = vst.msk [vmem:[%s7 + $0x58] sm:$0xff] %vm349, %v335
  %362 = vst.msk [vmem:[%s7 + $0x60] sm:$0xff] %vm349, %v338
  %363 = vst.msk [vmem:[%s7 + $0x68] sm:$0xff] %vm349, %v341
  %364 = vst.msk [vmem:[%s7 + $0x70] sm:$0xff] %vm349, %v344
  %365 = vst.msk [vmem:[%s7 + $0x78] sm:$0xff] %vm349, %v347
  // Predicated region
  $region30: #{tpu_custom_call.1} parent=0 // pred_check
    _
  $region31: #{tpu_custom_call.1} parent=0 // pred_check_branch
    %367 = sbr.rel (0) target = $region33
  $region32: #{tpu_custom_call.1} parent=0 // pred_region
    _
  $region33: #{tpu_custom_call.1} parent=0 // pred_fallthru
    _
  // Predicated region
  $region34: #{tpu_custom_call.1} parent=0 // pred_check
    _
  $region35: #{tpu_custom_call.1} parent=0 // pred_check_branch
    %369 = sbr.rel (0) target = $region37
  $region36: #{tpu_custom_call.1} parent=0 // pred_region
    _
  $region37: #{tpu_custom_call.1} parent=0 // pred_fallthru
    _

</llo_original>
